<compile_context>
chip_gen: v7x
topology: tpu7x:2x2x1
jax: 0.10.0
libtpu: 0.0.40
codegen_flags: <defaults>
</compile_context>

<pallas_src>
import functools
from math import sqrt

import numpy as np
import jax
import jax.numpy as jnp
from jax.experimental import pallas as pl
from jax.experimental.pallas import tpu as pltpu

EPS = 1e-15
LANES = 128
MAX_TILE_E = 16 * 1024          # lanes per edge tile (~0.5-1 MiB blocks)


# ----------------------------------------------------------------------------
# Pallas kernel: tiled GNNExplainer loss + sigmoid(edge_mask), one launch
# ----------------------------------------------------------------------------
def _explainer_loss_kernel(labels_ref, logits_ref, edge_ref,
                           loss_ref, sig_ref, *,
                           coff_edge_size, coff_edge_ent, num_edges,
                           tile_e, tiles_per_core):
    c = pl.program_id(0)        # core-parallel axis (v7x dual-TC)
    k = pl.program_id(1)        # edge-tile axis ("arbitrary" reduction)

    # ---- init resident per-core loss accumulator --------------------------
    @pl.when(k == 0)
    def _():
        loss_ref[...] = jnp.zeros_like(loss_ref)

    # ---- cross_entropy_with_logit(raw_preds, label): exactly once ---------
    @pl.when((k == 0) & (c == 0))
    def _():
        logits = logits_ref[...].astype(jnp.float32)             # [L, C]
        labels = labels_ref[...]                                  # [L, 1] int32
        L, C = logits.shape
        mx = jnp.max(logits, axis=-1, keepdims=True)
        sh = logits - mx
        lse = jnp.log(jnp.sum(jnp.exp(sh), axis=-1, keepdims=True))
        logp = sh - lse                                           # log_softmax
        onehot = (jax.lax.broadcasted_iota(jnp.int32, (L, C), 1) == labels
                  ).astype(jnp.float32)
        ce = -jnp.sum(onehot * logp, axis=-1, keepdims=True)      # [L, 1]
        loss_ref[...] = ce

    # ---- per-tile sigmoid + size/entropy regularizers ----------------------
    x = edge_ref[...].astype(jnp.float32)                         # [L, TE]
    L, TE = x.shape

    t = jnp.tanh(0.5 * x)                   # EUP op #1
    m = 0.5 + 0.5 * t                       # sigmoid(x)
    sig_ref[...] = m.astype(sig_ref.dtype)

    a = jnp.abs(x)
    r = 0.5 + 0.5 * jnp.abs(t)              # sigmoid(|x|) = max(m, 1-m)
    # -m*log(m) - (1-m)*log(1-m) == -log(r) + |x|*(1-r)
    ent = -jnp.log(r) + a * (1.0 - r)       # EUP op #2

    # padding-aware fused reduction (select also discards OOB-read garbage)
    off = (c * tiles_per_core + k) * tile_e
    col = jax.lax.broadcasted_iota(jnp.int32, (L, TE), 1)
    valid = (off + col) < num_edges
    contrib = coff_edge_size * m + (coff_edge_ent / num_edges) * ent
    reg = jnp.sum(jnp.where(valid, contrib, 0.0), axis=-1, keepdims=True)
    loss_ref[...] += reg                                          # [L, 1]


def _round_up(v, m):
    return ((v + m - 1) // m) * m


@functools.partial(jax.jit, static_argnames=("coff_edge_size", "coff_edge_ent"))
def explainer_losses_and_sigmoids(raw_preds, labels, edge_masks,
                                  coff_edge_size=0.001, coff_edge_ent=0.001):
    """Batched over classes.

    raw_preds : [L, C] f32 logits (one row per explained label)
    labels    : [L]    int labels
    edge_masks: [L, E] f32 edge-mask logits

    Returns (loss [L], sigmoid(edge_masks) [L, E])."""
    L, C = raw_preds.shape
    E = edge_masks.shape[-1]

    tile_e = min(MAX_TILE_E, _round_up(E, LANES))
    num_tiles = pl.cdiv(E, tile_e)
    n_cores = 2 if num_tiles >= 2 else 1          # v7x dual-TC split
    tiles_per_core = pl.cdiv(num_tiles, n_cores)
    last_tile = num_tiles - 1

    labels2d = labels.astype(jnp.int32).reshape(L, 1)
    logits = raw_preds.astype(jnp.float32)
    em = edge_masks.astype(jnp.float32)

    kernel = functools.partial(
        _explainer_loss_kernel,
        coff_edge_size=float(coff_edge_size),
        coff_edge_ent=float(coff_edge_ent),
        num_edges=int(E),
        tile_e=int(tile_e),
        tiles_per_core=int(tiles_per_core))

    def edge_map(c, k):
        # clamp the (possible) phantom last step of core 1 onto a real tile;
        # its contribution is masked out by the in-kernel validity test.
        return (0, jnp.minimum(c * tiles_per_core + k, last_tile))

    loss_parts, sig = pl.pallas_call(
        kernel,
        grid=(n_cores, tiles_per_core),
        out_shape=(jax.ShapeDtypeStruct((n_cores, L, 1), jnp.float32),
                   jax.ShapeDtypeStruct((L, E), jnp.float32)),
        in_specs=[pl.BlockSpec((L, 1), lambda c, k: (0, 0)),       # labels
                  pl.BlockSpec((L, C), lambda c, k: (0, 0)),       # logits
                  pl.BlockSpec((L, tile_e), edge_map)],            # edge mask
        out_specs=(pl.BlockSpec((None, L, 1), lambda c, k: (c, 0, 0)),
                   pl.BlockSpec((L, tile_e), edge_map)),
        compiler_params=pltpu.CompilerParams(
            dimension_semantics=("parallel", "arbitrary")),
    )(labels2d, logits, em)

    return jnp.sum(loss_parts, axis=0).reshape(L), sig


# ----------------------------------------------------------------------------
# Glue (host-side / plain JAX): self loops, deterministic mask init, forward
# ----------------------------------------------------------------------------
def add_remaining_self_loops_np(edge_index: np.ndarray, num_nodes: int):
    """PyG semantics: drop existing self loops, append one self loop per node."""
    mask = edge_index[0] != edge_index[1]
    loop = np.arange(num_nodes, dtype=edge_index.dtype)
    return np.concatenate([edge_index[:, mask], np.stack([loop, loop])], axis=1)


def node_explainer_forward(x, edge_index_np, num_classes,
                           coff_edge_size=0.001, coff_edge_ent=0.001,
                           target_label=None, key=None):
    if key is None:
        key = jax.random.PRNGKey(0)
    N, F = x.shape
    self_loop_edge_index = add_remaining_self_loops_np(np.asarray(edge_index_np), N)
    E = self_loop_edge_index.shape[1]

    labels_list = [l for l in range(num_classes)
                   if target_label is None or l == int(target_label)]
    L = len(labels_list)
    labels = jnp.asarray(labels_list, dtype=jnp.int32)

    # __set_masks__ for every explained label in one shot (torch.randn ->
    # jax.random; deterministic given `key`).
    k_feat, k_edge, k_pred = jax.random.split(key, 3)
    node_feat_masks = jax.random.normal(k_feat, (L, F), jnp.float32) * 0.1  # noqa: F841
    std = sqrt(2.0) * sqrt(2.0 / (2.0 * N))   # calculate_gain('relu') * sqrt(2/(2N))
    edge_masks_init = jax.random.normal(k_edge, (L, E), jnp.float32) * std

    # TODO(synk): real pipeline = external GNN forward + RandomForest
    # predict_proba + Adam loop over the masks; synthetic logits stand in.
    raw_preds = jax.random.normal(k_pred, (L, num_classes), jnp.float32)

    losses, sig_masks = explainer_losses_and_sigmoids(
        raw_preds, labels, edge_masks_init,
        coff_edge_size=coff_edge_size, coff_edge_ent=coff_edge_ent)

    edge_masks = [sig_masks[i] for i in range(L)]
    debug = (raw_preds, labels, edge_masks_init)
    return edge_masks, self_loop_edge_index, losses, debug


# ----------------------------------------------------------------------------
# Plain-JAX reference of the module's own math (EPS-guarded, like PyTorch)
# ----------------------------------------------------------------------------
def reference_losses_and_sigmoids(raw_preds, labels, edge_masks,
                                  coff_edge_size=0.001, coff_edge_ent=0.001):
    mx = jnp.max(raw_preds, axis=-1, keepdims=True)
    sh = raw_preds - mx
    logp = sh - jnp.log(jnp.sum(jnp.exp(sh), axis=-1, keepdims=True))
    ce = -jnp.take_along_axis(logp, labels[:, None].astype(jnp.int32), axis=-1)[:, 0]
    m = jax.nn.sigmoid(edge_masks)
    size_term = jnp.sum(m, axis=-1)
    ent = -m * jnp.log(m + EPS) - (1.0 - m) * jnp.log(1.0 - m + EPS)
    loss = ce + coff_edge_size * size_term + coff_edge_ent * jnp.mean(ent, axis=-1)
    return loss, m


# ----------------------------------------------------------------------------
if __name__ == "__main__":
    key = jax.random.PRNGKey(0)

    # Small synthetic graph: 8 nodes, 32 features, 12 directed edges, 4 classes.
    N, F, num_classes = 8, 32, 4
    kx, kfwd = jax.random.split(key)
    x = jax.random.normal(kx, (N, F), jnp.float32)
    edge_index = np.array(
        [[0, 1, 2, 3, 4, 5, 6, 7, 0, 2, 4, 6],
         [1, 2, 3, 4, 5, 6, 7, 0, 3, 5, 7, 1]], dtype=np.int32)

    edge_masks, self_loop_edge_index, losses, dbg = node_explainer_forward(
        x, edge_index, num_classes, key=kfwd)
    jax.block_until_ready(losses)
    for m in edge_masks:
        jax.block_until_ready(m)

    E = self_loop_edge_index.shape[1]
    assert self_loop_edge_index.shape == (2, 12 + N)
    assert len(edge_masks) == num_classes
    assert all(m.shape == (E,) for m in edge_masks)

    # Real tolerance check against the plain-JAX reference.
    raw_preds, labels, edge_masks_init = dbg
    ref_loss, ref_sig = reference_losses_and_sigmoids(
        raw_preds, labels, edge_masks_init)
    np.testing.assert_allclose(np.asarray(losses), np.asarray(ref_loss),
                               rtol=1e-5, atol=1e-6)
    np.testing.assert_allclose(np.asarray(jnp.stack(edge_masks)),
                               np.asarray(ref_sig), rtol=1e-5, atol=1e-6)

    print("KERNEL_OK")
</pallas_src>

<mosaic_0001>
module attributes {stable_mosaic.version = 11 : i64} {
  func.func @_explainer_loss_kernel(%arg0: i32, %arg1: i32, %arg2: memref<4x1xi32, #tpu.memory_space<vmem>>, %arg3: memref<4x4xf32, #tpu.memory_space<vmem>>, %arg4: memref<4x128xf32, #tpu.memory_space<vmem>>, %arg5: memref<1x4x1xf32, #tpu.memory_space<vmem>>, %arg6: memref<4x128xf32, #tpu.memory_space<vmem>>) attributes {dimension_semantics = [#tpu.dimension_semantics<parallel>, #tpu.dimension_semantics<arbitrary>], iteration_bounds = array<i64: 1, 1>, scalar_prefetch = 0 : i64, scratch_operands = 0 : i64, tpu.core_type = #tpu.core_type<tc>, window_params = [{pipeline_mode = #tpu.pipeline_mode<synchronous>, transform_indices = @transform_0, window_bounds = array<i64: 4, 1>}, {pipeline_mode = #tpu.pipeline_mode<synchronous>, transform_indices = @transform_1, window_bounds = array<i64: 4, 4>}, {transform_indices = @transform_2, window_bounds = array<i64: 4, 128>}, {transform_indices = @transform_3, window_bounds = array<i64: 1, 4, 1>}, {transform_indices = @transform_4, window_bounds = array<i64: 4, 128>}]} {
    %c0_i32 = arith.constant 0 : i32
    %0 = arith.cmpi eq, %arg1, %c0_i32 : i32
    %1 = arith.extui %0 : i1 to i32
    %c0_i32_0 = arith.constant 0 : i32
    %2 = arith.cmpi ne, %1, %c0_i32_0 : i32
    scf.if %2 {
      %cst_23 = arith.constant 0.000000e+00 : f32
      %53 = vector.broadcast %cst_23 : f32 to vector<4x1xf32>
      %c0_24 = arith.constant 0 : index
      %c0_25 = arith.constant 0 : index
      %c0_26 = arith.constant 0 : index
      %54 = vector.load %arg5[%c0_24, %c0_25, %c0_26] : memref<1x4x1xf32, #tpu.memory_space<vmem>>, vector<1x4x1xf32>
      %55 = vector.shape_cast %54 : vector<1x4x1xf32> to vector<4x1xf32>
      %56 = vector.shape_cast %53 : vector<4x1xf32> to vector<1x4x1xf32>
      tpu.vector_store %arg5[%c0_24, %c0_25, %c0_26], %56 {strides = array<i32>} : memref<1x4x1xf32, #tpu.memory_space<vmem>>, vector<1x4x1xf32>,
    } else {
    }
    %c0_i32_1 = arith.constant 0 : i32
    %3 = arith.cmpi eq, %arg1, %c0_i32_1 : i32
    %c0_i32_2 = arith.constant 0 : i32
    %4 = arith.cmpi eq, %arg0, %c0_i32_2 : i32
    %5 = arith.andi %3, %4 : i1
    %6 = arith.extui %5 : i1 to i32
    %c0_i32_3 = arith.constant 0 : i32
    %7 = arith.cmpi ne, %6, %c0_i32_3 : i32
    scf.if %7 {
      %c0_23 = arith.constant 0 : index
      %c0_24 = arith.constant 0 : index
      %53 = vector.load %arg3[%c0_23, %c0_24] : memref<4x4xf32, #tpu.memory_space<vmem>>, vector<4x4xf32>
      %c0_25 = arith.constant 0 : index
      %c0_26 = arith.constant 0 : index
      %54 = vector.load %arg2[%c0_25, %c0_26] : memref<4x1xi32, #tpu.memory_space<vmem>>, vector<4x1xi32>
      %cst_27 = arith.constant dense<0xFF800000> : vector<4xf32>
      %55 = vector.multi_reduction <maximumf>, %53, %cst_27 [1] : vector<4x4xf32> to vector<4xf32>
      %56 = vector.shape_cast %55 : vector<4xf32> to vector<4x1xf32>
      %57 = vector.broadcast %56 : vector<4x1xf32> to vector<4x4xf32>
      %58 = arith.subf %53, %57 : vector<4x4xf32>
      %59 = math.exp %58 : vector<4x4xf32>
      %cst_28 = arith.constant dense<0.000000e+00> : vector<4xf32>
      %60 = vector.multi_reduction <add>, %59, %cst_28 [1] : vector<4x4xf32> to vector<4xf32>
      %61 = vector.shape_cast %60 : vector<4xf32> to vector<4x1xf32>
      %62 = math.log %61 : vector<4x1xf32>
      %63 = vector.broadcast %62 : vector<4x1xf32> to vector<4x4xf32>
      %64 = arith.subf %58, %63 : vector<4x4xf32>
      %65 = tpu.iota {dimensions = array<i32: 1>} : vector<4x4xi32>
      %66 = vector.broadcast %54 : vector<4x1xi32> to vector<4x4xi32>
      %67 = arith.cmpi eq, %65, %66 : vector<4x4xi32>
      %68 = arith.extui %67 : vector<4x4xi1> to vector<4x4xi32>
      %69 = arith.sitofp %68 : vector<4x4xi32> to vector<4x4xf32>
      %70 = arith.mulf %69, %64 : vector<4x4xf32>
      %cst_29 = arith.constant dense<0.000000e+00> : vector<4xf32>
      %71 = vector.multi_reduction <add>, %70, %cst_29 [1] : vector<4x4xf32> to vector<4xf32>
      %72 = vector.shape_cast %71 : vector<4xf32> to vector<4x1xf32>
      %cst_30 = arith.constant 0.000000e+00 : f32
      %73 = vector.broadcast %cst_30 : f32 to vector<4x1xf32>
      %74 = arith.subf %73, %72 : vector<4x1xf32>
      %c0_31 = arith.constant 0 : index
      %c0_32 = arith.constant 0 : index
      %c0_33 = arith.constant 0 : index
      %75 = vector.load %arg5[%c0_31, %c0_32, %c0_33] : memref<1x4x1xf32, #tpu.memory_space<vmem>>, vector<1x4x1xf32>
      %76 = vector.shape_cast %75 : vector<1x4x1xf32> to vector<4x1xf32>
      %77 = vector.shape_cast %74 : vector<4x1xf32> to vector<1x4x1xf32>
      tpu.vector_store %arg5[%c0_31, %c0_32, %c0_33], %77 {strides = array<i32>} : memref<1x4x1xf32, #tpu.memory_space<vmem>>, vector<1x4x1xf32>,
    } else {
    }
    %c0 = arith.constant 0 : index
    %c0_4 = arith.constant 0 : index
    %8 = vector.load %arg4[%c0, %c0_4] : memref<4x128xf32, #tpu.memory_space<vmem>>, vector<4x128xf32>
    %cst = arith.constant 5.000000e-01 : f32
    %9 = vector.broadcast %cst : f32 to vector<4x128xf32>
    %10 = arith.mulf %9, %8 : vector<4x128xf32>
    %11 = math.tanh %10 : vector<4x128xf32>
    %cst_5 = arith.constant 5.000000e-01 : f32
    %12 = vector.broadcast %cst_5 : f32 to vector<4x128xf32>
    %13 = arith.mulf %12, %11 : vector<4x128xf32>
    %cst_6 = arith.constant 5.000000e-01 : f32
    %14 = vector.broadcast %cst_6 : f32 to vector<4x128xf32>
    %15 = arith.addf %14, %13 : vector<4x128xf32>
    %c0_7 = arith.constant 0 : index
    %c0_8 = arith.constant 0 : index
    %16 = vector.load %arg6[%c0_7, %c0_8] : memref<4x128xf32, #tpu.memory_space<vmem>>, vector<4x128xf32>
    tpu.vector_store %arg6[%c0_7, %c0_8], %15 {strides = array<i32>} : memref<4x128xf32, #tpu.memory_space<vmem>>, vector<4x128xf32>,
    %17 = math.absf %8 : vector<4x128xf32>
    %18 = math.absf %11 : vector<4x128xf32>
    %cst_9 = arith.constant 5.000000e-01 : f32
    %19 = vector.broadcast %cst_9 : f32 to vector<4x128xf32>
    %20 = arith.mulf %19, %18 : vector<4x128xf32>
    %cst_10 = arith.constant 5.000000e-01 : f32
    %21 = vector.broadcast %cst_10 : f32 to vector<4x128xf32>
    %22 = arith.addf %21, %20 : vector<4x128xf32>
    %23 = math.log %22 : vector<4x128xf32>
    %cst_11 = arith.constant 0.000000e+00 : f32
    %24 = vector.broadcast %cst_11 : f32 to vector<4x128xf32>
    %25 = arith.subf %24, %23 : vector<4x128xf32>
    %cst_12 = arith.constant 1.000000e+00 : f32
    %26 = vector.broadcast %cst_12 : f32 to vector<4x128xf32>
    %27 = arith.subf %26, %22 : vector<4x128xf32>
    %28 = arith.mulf %17, %27 : vector<4x128xf32>
    %29 = arith.addf %25, %28 : vector<4x128xf32>
    %c1_i32 = arith.constant 1 : i32
    %30 = arith.muli %arg0, %c1_i32 : i32
    %31 = arith.addi %30, %arg1 : i32
    %c128_i32 = arith.constant 128 : i32
    %32 = arith.muli %31, %c128_i32 : i32
    %33 = tpu.iota {dimensions = array<i32: 1>} : vector<4x128xi32>
    %34 = vector.broadcast %32 : i32 to vector<4x128xi32>
    %35 = arith.addi %34, %33 : vector<4x128xi32>
    %c20_i32 = arith.constant 20 : i32
    %36 = vector.broadcast %c20_i32 : i32 to vector<4x128xi32>
    %37 = arith.cmpi slt, %35, %36 : vector<4x128xi32>
    %cst_13 = arith.constant 1.000000e-03 : f32
    %38 = vector.broadcast %cst_13 : f32 to vector<4x128xf32>
    %39 = arith.mulf %38, %15 : vector<4x128xf32>
    %cst_14 = arith.constant 5.000000e-05 : f32
    %40 = vector.broadcast %cst_14 : f32 to vector<4x128xf32>
    %41 = arith.mulf %40, %29 : vector<4x128xf32>
    %42 = arith.addf %39, %41 : vector<4x128xf32>
    %cst_15 = arith.constant 0.000000e+00 : f32
    %43 = vector.broadcast %cst_15 : f32 to vector<4x128xf32>
    %44 = arith.select %37, %42, %43 : vector<4x128xi1>, vector<4x128xf32>
    %cst_16 = arith.constant dense<0.000000e+00> : vector<4xf32>
    %45 = vector.multi_reduction <add>, %44, %cst_16 [1] : vector<4x128xf32> to vector<4xf32>
    %46 = vector.shape_cast %45 : vector<4xf32> to vector<4x1xf32>
    %c0_17 = arith.constant 0 : index
    %c0_18 = arith.constant 0 : index
    %c0_19 = arith.constant 0 : index
    %47 = vector.load %arg5[%c0_17, %c0_18, %c0_19] : memref<1x4x1xf32, #tpu.memory_space<vmem>>, vector<1x4x1xf32>
    %48 = vector.shape_cast %47 : vector<1x4x1xf32> to vector<4x1xf32>
    %49 = arith.addf %48, %46 : vector<4x1xf32>
    %c0_20 = arith.constant 0 : index
    %c0_21 = arith.constant 0 : index
    %c0_22 = arith.constant 0 : index
    %50 = vector.load %arg5[%c0_20, %c0_21, %c0_22] : memref<1x4x1xf32, #tpu.memory_space<vmem>>, vector<1x4x1xf32>
    %51 = vector.shape_cast %50 : vector<1x4x1xf32> to vector<4x1xf32>
    %52 = vector.shape_cast %49 : vector<4x1xf32> to vector<1x4x1xf32>
    tpu.vector_store %arg5[%c0_20, %c0_21, %c0_22], %52 {strides = array<i32>} : memref<1x4x1xf32, #tpu.memory_space<vmem>>, vector<1x4x1xf32>,
    return
  }
  func.func @transform_0(%arg0: i32, %arg1: i32) -> (i32, i32) {
    %c0_i32 = arith.constant 0 : i32
    %c0_i32_0 = arith.constant 0 : i32
    %c0_i32_1 = arith.constant 0 : i32
    return %c0_i32, %c0_i32_0 : i32, i32
  }
  func.func @transform_1(%arg0: i32, %arg1: i32) -> (i32, i32) {
    %c0_i32 = arith.constant 0 : i32
    %c0_i32_0 = arith.constant 0 : i32
    %c0_i32_1 = arith.constant 0 : i32
    return %c0_i32, %c0_i32_0 : i32, i32
  }
  func.func @transform_2(%arg0: i32, %arg1: i32) -> (i32, i32) {
    %c1_i32 = arith.constant 1 : i32
    %0 = arith.muli %arg0, %c1_i32 : i32
    %1 = arith.addi %0, %arg1 : i32
    %c0_i32 = arith.constant 0 : i32
    %2 = arith.minsi %1, %c0_i32 : i32
    %c0_i32_0 = arith.constant 0 : i32
    %c0_i32_1 = arith.constant 0 : i32
    return %c0_i32_0, %2 : i32, i32
  }
  func.func @transform_3(%arg0: i32, %arg1: i32) -> (i32, i32, i32) {
    %c0_i32 = arith.constant 0 : i32
    %c0_i32_0 = arith.constant 0 : i32
    %c0_i32_1 = arith.constant 0 : i32
    return %arg0, %c0_i32, %c0_i32_0 : i32, i32, i32
  }
  func.func @transform_4(%arg0: i32, %arg1: i32) -> (i32, i32) {
    %c1_i32 = arith.constant 1 : i32
    %0 = arith.muli %arg0, %c1_i32 : i32
    %1 = arith.addi %0, %arg1 : i32
    %c0_i32 = arith.constant 0 : i32
    %2 = arith.minsi %1, %c0_i32 : i32
    %c0_i32_0 = arith.constant 0 : i32
    %c0_i32_1 = arith.constant 0 : i32
    return %c0_i32_0, %2 : i32, i32
  }
}

</mosaic_0001>

<llo_original>
// kernel: explainer_losses_and_sigmoids.1
$region0: #{explainer_losses_and_sigmoids.1}
  #allocation0 [shape = 'u32[]', space=smem, size = 0x4, offset = 0x4, fixed_abs, tag = 'smem constant byte address 0x4 - core index']
  #allocation1 [shape = 'u32[144,128]{1,0:T(1,128)}', space=vmem, size = 0x12000, scoped, tag = 'internal scratch']
  %s0 = inlined_call_operand.vmem [shape: s32[4,1], index: 0, kind: input, shape index: {}]
  %s1 = inlined_call_operand.vmem [shape: f32[4,4], index: 1, kind: input, shape index: {}]
  %s2 = inlined_call_operand.vmem [shape: f32[4,20], index: 2, kind: input, shape index: {}]
  %s3 = inlined_call_operand.vmem [shape: f32[1,4,1], index: 3, kind: output, shape index: {0}]
  %s4 = inlined_call_operand.hbm [shape: f32[4,20], index: 4, kind: output, shape index: {1}]
  %5 = xla_tuple %s3, %s4
  %s6 = sld [smem:[#allocation0]]
  $region38: #{explainer_losses_and_sigmoids.1} parent=0
    _
  %s8 = ssub.s32 1, %s6
  %s9 = scalar_select 0, %s8, %s6
  $region1: #{explainer_losses_and_sigmoids.1} parent=0
    #allocation2 [shape = 'u8[2048]{0}', space=vmem, size = 0x800, scoped, tag = 'output window, operand 1, single buffered']
    #allocation3 [shape = 's32[1]{0}', space=sflag, size = 0x4, scoped, tag = 'scoped memory for explainer_losses_and_sigmoids.1']
    %10 = vsyncpa [#allocation3], 0
    // Predicated region
    $region2: #{explainer_losses_and_sigmoids.1} parent=1 // pred_check
      _
    $region3: #{explainer_losses_and_sigmoids.1} parent=1 // pred_check_branch
      %12 = sbr.rel (0) target = $region5
    $region4: #{explainer_losses_and_sigmoids.1} parent=1 // pred_region
      _
    $region5: #{explainer_losses_and_sigmoids.1} parent=1 // pred_fallthru
      _
    // Predicated region
    $region6: #{explainer_losses_and_sigmoids.1} parent=1 // pred_check
      _
    $region7: #{explainer_losses_and_sigmoids.1} parent=1 // pred_check_branch
      %14 = sbr.rel (0) target = $region9
    $region8: #{explainer_losses_and_sigmoids.1} parent=1 // pred_region
      _
    $region9: #{explainer_losses_and_sigmoids.1} parent=1 // pred_fallthru
      _
    // Predicated region
    $region10: #{explainer_losses_and_sigmoids.1} parent=1 // pred_check
      _
    $region11: #{explainer_losses_and_sigmoids.1} parent=1 // pred_check_branch
      %16 = sbr.rel (0) target = $region13
    $region12: #{explainer_losses_and_sigmoids.1} parent=1 // pred_region
      %s17 = sadd.s32 0, 0
      %p18 = scmp.lt.s32.totalorder %s17, 0
      %s19 = scalar_select %p18, %s17, 0
      %p20 = scmp.lt.s32.totalorder %s19, 0
      %s21 = scalar_select %p20, %s19, 0
      %s22 = smul.addr %s21, 4
      %s23 = scalar_lea.vmem %s2, %s22
      %s24 = sadd.s32 0, 0
      %p25 = scmp.lt.s32.totalorder %s24, 0
      %s26 = scalar_select %p25, %s24, 0
    $region13: #{explainer_losses_and_sigmoids.1} parent=1 // pred_fallthru
      _
    %s27 = sadd.s32 0, 0
    %p28 = scmp.lt.s32.totalorder %s27, 0
    %s29 = scalar_select %p28, %s27, 0
    %p30 = scmp.lt.s32.totalorder %s29, 0
    %s31 = scalar_select %p30, %s29, 0
    %s32 = smul.addr %s31, 4
    %s33 = scalar_lea.vmem %s2, %s32
    %s34 = sadd.s32 0, 0
    %p35 = scmp.lt.s32.totalorder %s34, 0
    %s36 = scalar_select %p35, %s34, 0
    %p37 = scmp.lt.s32.totalorder %s36, 0
    %s38 = scalar_select %p37, %s36, 0
    %s39 = smul.addr %s38, 4
    %s40 = scalar_lea.vmem %s2, %s39
    %s41 = sadd.s32 0, 0
    %p42 = scmp.lt.s32.totalorder %s41, 0
    %s43 = scalar_select %p42, %s41, 0
    %s44 = sadd.s32 0, 0
    %p45 = scmp.lt.s32.totalorder %s44, 0
    %s46 = scalar_select %p45, %s44, 0
    %p47 = scmp.eq.s32.totalorder 0, 0
    // Predicated region
    $region14: #{explainer_losses_and_sigmoids.1} parent=1 // pred_check
      %p48 = pneg %p47
    $region15: #{explainer_losses_and_sigmoids.1} parent=1 // pred_check_branch
      %50 = sbr.rel (%p48) target = $region17
    $region16: #{explainer_losses_and_sigmoids.1} parent=1 // pred_region
      %vm51 = vcmask 3072
      %52 = vst.msk [vmem:[%s3] sm:$0xf] %vm51, 0.0
    $region17: #{explainer_losses_and_sigmoids.1} parent=1 // pred_fallthru
      _
    %p53 = scmp.eq.s32.totalorder 0, 0
    %p54 = pnand %p47, %p53
    %p55 = pneg %p54
    // Predicated region
    $region18: #{explainer_losses_and_sigmoids.1} parent=1 // pred_check
      _
    $region19: #{explainer_losses_and_sigmoids.1} parent=1 // pred_check_branch
      %57 = sbr.rel (%p54) target = $region21
    $region20: #{explainer_losses_and_sigmoids.1} parent=1 // pred_region
      %v58 = vld [vmem:[%s1] sm:$0xf]
      %v59 = vld [vmem:[%s0] sm:$0xf]
      %vm60 = vcmask 27648
      %v61 = vsel %vm60, %v58, -inf
      %62 = vmax.xlane.f32.xlu0 %v61
      %v63 = vpop.xlane.xlu0 %62
      %v64 = vsub.f32 %v58, %v63
      %v65 = vmul.f32 %v64, 1.442695
      %v66 = vpow.pop %v65
      %v67 = vsel %vm60, %v66, 0.0
      %68 = vadd.xlane.f32.xlu0 %v67
      %v69 = vpop.xlane.xlu0 %68
      %v70 = vlog2.pop %v69
      %v71 = vmul.f32 %v70, 0.6931472
      %v72 = vsub.f32 %v64, %v71
      %v73 = vlaneseq
      %v74 = vand.u32 %v73, 127
      %75 = vset.pattern.permute.xlu0 0
      %76 = vperm.xlu0 %75, %v59
      %v77 = vpop.permute.xlu0 %76
      %vm78 = vcmp.eq.s32.totalorder %v74, %v77
      %v79 = vsel %vm78, 1, 0
      %v80 = vcvt.s32.f32 %v79
      %v81 = vmul.f32 %v80, %v72
      %v82 = vsel %vm60, %v81, 0.0
      %83 = vadd.xlane.f32.xlu0 %v82
      %v84 = vpop.xlane.xlu0 %83
      %v85 = vsub.f32 0.0, %v84
      %vm86 = vcmask 3072
      %87 = vst.msk [vmem:[%s3] sm:$0xf] %vm86, %v85
    $region21: #{explainer_losses_and_sigmoids.1} parent=1 // pred_fallthru
      _
    %v88 = vld [vmem:[%s40] sm:$0xf]
    %v89 = vmul.f32 %v88, 0.5
    %v90 = vtanh.pop %v89
    %v91 = vmul.f32 %v90, 0.5
    %v92 = vadd.f32 %v91, 0.5
    %93 = vst [vmem:[#allocation2] sm:$0xf] %v92
    %v94 = vand.u32 2147483647, %v88
    %v95 = vand.u32 2147483647, %v90
    %v96 = vmul.f32 %v95, 0.5
    %v97 = vadd.f32 %v96, 0.5
    %v98 = vlog2.pop %v97
    %v99 = vmul.f32 %v98, 0.6931472
    %v100 = vsub.f32 0.0, %v99
    %v101 = vsub.f32 1.0, %v97
    %v102 = vmul.f32 %v94, %v101
    %v103 = vadd.f32 %v100, %v102
    %s104 = sadd.s32 0, 0
    %s105 = smul.u32 %s104, 128
    %v106 = vlaneseq
    %v107 = vand.u32 %v106, 127
    %v108 = vstv %s105
    %v109 = vadd.s32 %v108, %v107
    %vm110 = vcmp.lt.s32.totalorder %v109, 20
    %v111 = vmul.f32 %v92, 0.001
    %v112 = vmul.f32 %v103, 5e-05
    %v113 = vadd.f32 %v111, %v112
    %v114 = vsel %vm110, %v113, 0.0
    %vm115 = vcmask 1043456
    %v116 = vsel %vm115, %v114, 0.0
    %117 = vadd.xlane.f32.xlu0 %v116
    %v118 = vpop.xlane.xlu0 %117
    %v119 = vld [vmem:[%s3] sm:$0xf]
    %v120 = vadd.f32 %v119, %v118
    %vm121 = vcmask 3072
    %122 = vst.msk [vmem:[%s3] sm:$0xf] %vm121, %v120
    // Predicated region
    $region22: #{explainer_losses_and_sigmoids.1} parent=1 // pred_check
      _
    $region23: #{explainer_losses_and_sigmoids.1} parent=1 // pred_check_branch
      %124 = sbr.rel (0) target = $region25
    $region24: #{explainer_losses_and_sigmoids.1} parent=1 // pred_region
      _
    $region25: #{explainer_losses_and_sigmoids.1} parent=1 // pred_fallthru
      _
    // Predicated region
    $region26: #{explainer_losses_and_sigmoids.1} parent=1 // pred_check
      _
    $region27: #{explainer_losses_and_sigmoids.1} parent=1 // pred_check_branch
      %126 = sbr.rel (0) target = $region29
    $region28: #{explainer_losses_and_sigmoids.1} parent=1 // pred_region
      %s127 = sadd.s32 0, 0
      %p128 = scmp.lt.s32.totalorder %s127, 0
      %s129 = scalar_select %p128, %s127, 0
      %s131 = ssub.s32 64, 64
      %132 = vsyncadd [#allocation3], %s131
      %s133 = smul.addr %s129, 64
      %s134 = scalar_lea.hbm %s4, %s133
      %s136 = sshll.u32 [#allocation2], 4
      %s137 = int_to_ptr.vmem [resolvable:$true] %s136
      %139 = dma.vmem_to_hbm [thread:$0]  %s137, 64, %s134, [#allocation3]
    $region29: #{explainer_losses_and_sigmoids.1} parent=1 // pred_fallthru
      _
    // Predicated region
    $region30: #{explainer_losses_and_sigmoids.1} parent=1 // pred_check
      _
    $region31: #{explainer_losses_and_sigmoids.1} parent=1 // pred_check_branch
      %141 = sbr.rel (0) target = $region33
    $region32: #{explainer_losses_and_sigmoids.1} parent=1 // pred_region
      _
    $region33: #{explainer_losses_and_sigmoids.1} parent=1 // pred_fallthru
      _
    // Predicated region
    $region34: #{explainer_losses_and_sigmoids.1} parent=1 // pred_check
      _
    $region35: #{explainer_losses_and_sigmoids.1} parent=1 // pred_check_branch
      %143 = sbr.rel (0) target = $region37
    $region36: #{explainer_losses_and_sigmoids.1} parent=1 // pred_region
      %144 = dma.done [#allocation3], 64
    $region37: #{explainer_losses_and_sigmoids.1} parent=1 // pred_fallthru
      _
    %145 = vsyncpa [#allocation3], 1

</llo_original>
